<compile_context>
chip_gen: v6e
topology: v6e:2x2x1
jax: 0.10.0
libtpu: 0.0.40
codegen_flags: <defaults>
</compile_context>

<pallas_src>
import jax
import jax.numpy as jnp
from jax.experimental import pallas as pl
from jax.experimental.pallas import tpu as pltpu


# ----------------------------- kernels --------------------------------------

def _fused_kernel(w_ref, x_ref, o_ref):
    # w_ref: (D_in, tmi)  packed W_m = D_m @ E_m, tile_m projections wide
    # x_ref: (tile_n, D_in)
    # o_ref: (tile_n, tmi)   single wide lane-dense store per grid step
    o_ref[...] = jnp.dot(
        x_ref[...], w_ref[...], preferred_element_type=jnp.float32
    ).astype(o_ref.dtype)


def _two_gemm_kernel(enc_ref, dec_ref, x_ref, o_ref):
    # enc_ref: (D_in, D_out), dec_ref: (D_out, D_in)
    # x_ref:   (tile_n, D_in), o_ref: (tile_n, D_in)
    a = jnp.dot(x_ref[...], enc_ref[...], preferred_element_type=jnp.float32)
    o_ref[...] = jnp.dot(
        a.astype(dec_ref.dtype), dec_ref[...], preferred_element_type=jnp.float32
    ).astype(o_ref.dtype)


# --------------------------- helper utilities --------------------------------

def _round_up(x, m):
    return (x + m - 1) // m * m


def _cdiv(a, b):
    return -(-a // b)


def _vmem_budget_bytes():
    """Per-core VMEM budget sized per TPU generation."""
    try:
        phys = int(pltpu.get_tpu_info().vmem_capacity_bytes)
    except Exception:
        phys = 64 * 1024 * 1024  # conservative fallback: v7x per-TC VMEM
    # ~3/4 of physical: 48 MiB on v7x (64 MiB phys), 96 MiB on v5e/v6e (128 MiB).
    return min(phys * 3 // 4, 100 * 1024 * 1024)


def _pick_tile_m(M, D_in, lane_cap=512):
    """Smallest divisor t of M giving a lane-dense packed width t*D_in % 128 == 0."""
    for t in range(1, M + 1):
        if M % t:
            continue
        if (t * D_in) % 128 == 0 and t * D_in <= max(lane_cap, D_in):
            return t
    # No lane-dense divisor exists: pack all M projections so the output block
    # equals the full (M*D_in) last dim (always a legal BlockSpec).  The fused
    # weight is NOT inflated by this choice (it is M*D_in*D_in elements either
    # way); VMEM feasibility is checked by _pick_tile_n.
    return M


def _pick_tile_n(N, per_row_bytes, fixed_bytes, budget_bytes, cap):
    avail = budget_bytes - fixed_bytes - (1 << 20)  # 1 MiB slack for internal scratch
    rows_fit = (avail // per_row_bytes) // 8 * 8 if avail > 0 else 0
    if rows_fit < 8:
        # TODO(synk): tile the contraction / output-lane dims for very large
        # D_in instead of failing; not needed for the module's typical sizes.
        raise ValueError(
            f"Projection kernel does not fit VMEM budget ({budget_bytes} B): "
            f"fixed={fixed_bytes} B, per_row={per_row_bytes} B"
        )
    tile_n_max = min(cap, rows_fit)
    # Balanced tiles: padding waste stays under one 8-row sublane block.
    n_tiles = _cdiv(N, tile_n_max)
    return _round_up(_cdiv(N, n_tiles), 8)


# ------------------------------ wrapper ---------------------------------------

def projection_forward(enc_w, dec_w, x, *, compute_dtype=jnp.float32):
    """enc_w: (M, D_out, D_in), dec_w: (M, D_in, D_out), x: (N, D_in) -> (N, M, D_in)."""
    M, D_out, D_in = enc_w.shape
    N = x.shape[0]

    enc_w = enc_w.astype(jnp.float32)
    dec_w = dec_w.astype(jnp.float32)
    x32 = x.astype(jnp.float32)

    budget = _vmem_budget_bytes()
    cap_n = 2048 if budget > 64 * 1024 * 1024 else 1024

    # ---- path selection (per-sample MXU flops per projection) ----
    #   fused single GEMM (W = D @ E): 2 * D_in^2
    #   two dense GEMMs (tile_m = 1):  4 * D_in * D_out   (needs D_in % 128 == 0
    #                                                      to stay lane-dense)
    use_two_gemm = (D_in % 128 == 0) and (D_in > 2 * D_out)

    if use_two_gemm:
        tile_m = 1
        tmi = D_in
        enc_T = jnp.transpose(enc_w, (0, 2, 1)).astype(compute_dtype)  # (M, D_in, D_out)
        dec_T = jnp.transpose(dec_w, (0, 2, 1)).astype(compute_dtype)  # (M, D_out, D_in)
        weight_elems = 2 * M * D_in * D_out
        fixed_bytes = 2 * 4 * 2 * D_in * D_out            # double-buffered weight blocks
        per_row_bytes = 2 * 4 * (D_in + tmi) + 4 * D_out  # x + out (x2) + intermediate
        kernel = _two_gemm_kernel
    else:
        tile_m = _pick_tile_m(M, D_in)
        tmi = tile_m * D_in
        # W[m] = dec_w[m] @ enc_w[m];  W_pack[g, j, m*D_in + i] = W[g*tile_m + m, i, j]
        W = jnp.einsum("mio,moj->mij", dec_w, enc_w,
                       precision=jax.lax.Precision.HIGHEST)
        W_pack = (
            W.reshape(M // tile_m, tile_m, D_in, D_in)
            .transpose(0, 3, 1, 2)
            .reshape(M // tile_m, D_in, tmi)
            .astype(compute_dtype)
        )
        weight_elems = M * D_in * D_in
        fixed_bytes = 2 * 4 * D_in * tmi
        per_row_bytes = 2 * 4 * (D_in + tmi)
        kernel = _fused_kernel

    n_mt = M // tile_m
    x_c = x32.astype(compute_dtype)

    # ---- N tiling from the VMEM budget ----
    tile_n = _pick_tile_n(max(N, 8), per_row_bytes, fixed_bytes, budget, cap_n)
    n_pad = _round_up(max(N, 8), tile_n)
    if n_pad != N:
        x_c = jnp.pad(x_c, ((0, n_pad - N), (0, 0)))
    n_nt = n_pad // tile_n

    # ---- grid order: keep the heavier-traffic operand resident ----
    itemsize = jnp.dtype(compute_dtype).itemsize
    w_bytes = weight_elems * itemsize
    x_bytes = n_pad * D_in * itemsize
    g_innermost = (n_nt * w_bytes + x_bytes) <= (w_bytes + n_mt * x_bytes)
    if g_innermost:
        grid = (n_nt, n_mt)
        _n = lambda n, g: n
        _g = lambda n, g: g
    else:
        grid = (n_mt, n_nt)
        _n = lambda g, n: n
        _g = lambda g, n: g

    x_spec = pl.BlockSpec((tile_n, D_in), lambda *ij: (_n(*ij), 0))
    o_spec = pl.BlockSpec((tile_n, tmi), lambda *ij: (_n(*ij), _g(*ij)))

    if use_two_gemm:
        in_specs = [
            pl.BlockSpec((None, D_in, D_out), lambda *ij: (_g(*ij), 0, 0)),
            pl.BlockSpec((None, D_out, D_in), lambda *ij: (_g(*ij), 0, 0)),
            x_spec,
        ]
        operands = (enc_T, dec_T, x_c)
    else:
        in_specs = [
            pl.BlockSpec((None, D_in, tmi), lambda *ij: (_g(*ij), 0, 0)),
            x_spec,
        ]
        operands = (W_pack, x_c)

    out2d = pl.pallas_call(
        kernel,
        out_shape=jax.ShapeDtypeStruct((n_pad, M * D_in), jnp.float32),
        grid_spec=pltpu.PrefetchScalarGridSpec(
            num_scalar_prefetch=0,
            grid=grid,
            in_specs=in_specs,
            out_specs=o_spec,
        ),
        compiler_params=pltpu.CompilerParams(
            dimension_semantics=("parallel", "parallel"),
            vmem_limit_bytes=budget,
        ),
    )(*operands)

    # (N, M*D_in) -> (N, M, D_in): trailing-dim split, no data movement.
    return out2d[:N].reshape(N, M, D_in)


def projection_reference(enc_w, dec_w, x):
    # a[m, n, o] = sum_j x[n, j] * enc_w[m, o, j]
    a = jnp.einsum("nj,moj->mno", x, enc_w, precision=jax.lax.Precision.HIGHEST)
    # out[n, m, i] = sum_o a[m, n, o] * dec_w[m, i, o]
    return jnp.einsum("mno,mio->nmi", a, dec_w, precision=jax.lax.Precision.HIGHEST)


if __name__ == "__main__":
    key = jax.random.PRNGKey(0)

    def _check(M, D_in, D_out, N, key):
        k_e, k_d, k_x = jax.random.split(key, 3)
        enc_w = (0.01 * jax.random.normal(k_e, (M, D_out, D_in))).astype(jnp.float32)
        dec_w = (0.01 * jax.random.normal(k_d, (M, D_in, D_out))).astype(jnp.float32)
        x = jax.random.normal(k_x, (N, D_in), dtype=jnp.float32)

        out = jax.block_until_ready(projection_forward(enc_w, dec_w, x))
        ref = projection_reference(enc_w, dec_w, x)
        assert out.shape == (N, M, D_in), out.shape
        assert jnp.allclose(out, ref, atol=1e-5, rtol=1e-4), (
            f"mismatch M={M} D_in={D_in} D_out={D_out} N={N}: "
            f"max abs err {jnp.max(jnp.abs(out - ref))}"
        )

    keys = jax.random.split(key, 3)
    # Fused single-GEMM path, lane-dense tile_m packing (module-typical shapes).
    _check(M=4, D_in=32, D_out=16, N=8, key=keys[0])
    # Two-GEMM path (D_in % 128 == 0 and D_in > 2*D_out): no block-diag, tile_m=1.
    _check(M=2, D_in=128, D_out=16, N=24, key=keys[1])
    # Fused fallback (no lane-dense divisor of M): full-width output block.
    _check(M=3, D_in=48, D_out=8, N=10, key=keys[2])

    print("KERNEL_OK")
</pallas_src>

<mosaic_0001>
module attributes {stable_mosaic.version = 11 : i64} {
  func.func @_fused_kernel(%arg0: i32, %arg1: i32, %arg2: memref<1x32x128xf32, #tpu.memory_space<vmem>>, %arg3: memref<8x32xf32, #tpu.memory_space<vmem>>, %arg4: memref<8x128xf32, #tpu.memory_space<vmem>>) attributes {dimension_semantics = [#tpu.dimension_semantics<parallel>, #tpu.dimension_semantics<parallel>], iteration_bounds = array<i64: 1, 1>, scalar_prefetch = 0 : i64, scratch_operands = 0 : i64, tpu.core_type = #tpu.core_type<tc>, window_params = [{transform_indices = @transform_0, window_bounds = array<i64: 1, 32, 128>}, {transform_indices = @transform_1, window_bounds = array<i64: 8, 32>}, {transform_indices = @transform_2, window_bounds = array<i64: 8, 128>}]} {
    %c0 = arith.constant 0 : index
    %c0_0 = arith.constant 0 : index
    %0 = vector.load %arg3[%c0, %c0_0] : memref<8x32xf32, #tpu.memory_space<vmem>>, vector<8x32xf32>
    %c0_1 = arith.constant 0 : index
    %c0_2 = arith.constant 0 : index
    %c0_3 = arith.constant 0 : index
    %1 = vector.load %arg2[%c0_1, %c0_2, %c0_3] : memref<1x32x128xf32, #tpu.memory_space<vmem>>, vector<1x32x128xf32>
    %2 = vector.shape_cast %1 : vector<1x32x128xf32> to vector<32x128xf32>
    %cst = arith.constant dense<0.000000e+00> : vector<8x128xf32>
    %3 = tpu.matmul %0, %2, %cst {dimension_numbers = #tpu.dot_dimension_numbers<[1], [0], [0], [1], [0, 0, 1, 1], [], []>} : vector<8x32xf32>, vector<32x128xf32>, vector<8x128xf32> -> vector<8x128xf32>
    %c0_4 = arith.constant 0 : index
    %c0_5 = arith.constant 0 : index
    %4 = vector.load %arg4[%c0_4, %c0_5] : memref<8x128xf32, #tpu.memory_space<vmem>>, vector<8x128xf32>
    tpu.vector_store %arg4[%c0_4, %c0_5], %3 {strides = array<i32>} : memref<8x128xf32, #tpu.memory_space<vmem>>, vector<8x128xf32>,
    return
  }
  func.func @transform_0(%arg0: i32, %arg1: i32) -> (i32, i32, i32) {
    %c0_i32 = arith.constant 0 : i32
    %c0_i32_0 = arith.constant 0 : i32
    %c0_i32_1 = arith.constant 0 : i32
    return %arg1, %c0_i32, %c0_i32_0 : i32, i32, i32
  }
  func.func @transform_1(%arg0: i32, %arg1: i32) -> (i32, i32) {
    %c0_i32 = arith.constant 0 : i32
    %c0_i32_0 = arith.constant 0 : i32
    return %arg0, %c0_i32 : i32, i32
  }
  func.func @transform_2(%arg0: i32, %arg1: i32) -> (i32, i32) {
    %c0_i32 = arith.constant 0 : i32
    return %arg0, %arg1 : i32, i32
  }
}

</mosaic_0001>

<llo_original>
// kernel: tpu_custom_call.1
$region0: #{tpu_custom_call.1}
  #allocation0 [shape = 'u32[]', space=smem, size = 0x4, offset = 0x4, fixed_abs, tag = 'smem constant byte address 0x4 - core index']
  #allocation1 [shape = 'u32[144,128]{1,0:T(1,128)}', space=vmem, size = 0x12000, scoped, tag = 'internal scratch']
  %s0 = inlined_call_operand.hbm [shape: f32[1,32,128], index: 0, kind: input, shape index: {}]
  %s1 = inlined_call_operand.hbm [shape: f32[8,32], index: 1, kind: input, shape index: {}]
  %s2 = inlined_call_operand.hbm [shape: f32[8,128], index: 2, kind: output, shape index: {}]
  %s3 = sld [smem:[#allocation0]]
  $region26: #{tpu_custom_call.1} parent=0
    _
  %s5 = ssub.s32 1, %s3
  %s6 = scalar_select 0, %s5, %s3
  $region1: #{tpu_custom_call.1} parent=0
    #allocation2 [shape = 'u8[16384]{0}', space=vmem, size = 0x4000, scoped, tag = 'input window, operand 0, single buffered']
    #allocation3 [shape = 's32[1]{0}', space=sflag, size = 0x4, scoped, tag = 'scoped memory for tpu_custom_call.1']
    #allocation4 [shape = 's32[1]{0}', space=sflag, size = 0x4, scoped, tag = 'scoped memory for tpu_custom_call.1']
    #allocation5 [shape = 'u8[4096]{0}', space=vmem, size = 0x1000, scoped, tag = 'input window, operand 1, single buffered']
    #allocation6 [shape = 's32[1]{0}', space=sflag, size = 0x4, scoped, tag = 'scoped memory for tpu_custom_call.1']
    #allocation7 [shape = 'u8[4096]{0}', space=vmem, size = 0x1000, scoped, tag = 'output window, operand 0, single buffered']
    %7 = vsyncpa [#allocation3], 0
    %8 = vsyncpa [#allocation6], 0
    %9 = vsyncpa [#allocation4], 0
    // Predicated region
    $region2: #{tpu_custom_call.1} parent=1 // pred_check
      _
    $region3: #{tpu_custom_call.1} parent=1 // pred_check_branch
      %11 = sbr.rel (0) target = $region5
    $region4: #{tpu_custom_call.1} parent=1 // pred_region
      %s13 = ssub.s32 512, 512
      %14 = vsyncadd [#allocation3], %s13
      %s15 = sshll.u32 [#allocation2], 4
      %s16 = int_to_ptr.vmem [resolvable:$true] %s15
      %21 = dma.hbm_to_vmem [thread:$0]  %s0, 512, %s16, [#allocation3], 128, 128, 8
    $region5: #{tpu_custom_call.1} parent=1 // pred_fallthru
      _
    // Predicated region
    $region6: #{tpu_custom_call.1} parent=1 // pred_check
      _
    $region7: #{tpu_custom_call.1} parent=1 // pred_check_branch
      %23 = sbr.rel (0) target = $region9
    $region8: #{tpu_custom_call.1} parent=1 // pred_region
      %s25 = ssub.s32 128, 128
      %26 = vsyncadd [#allocation6], %s25
      %s28 = sshll.u32 [#allocation5], 4
      %s29 = int_to_ptr.vmem [resolvable:$true] %s28
      %31 = dma.hbm_to_vmem [thread:$0]  %s1, 128, %s29, [#allocation6]
    $region9: #{tpu_custom_call.1} parent=1 // pred_fallthru
      _
    // Predicated region
    $region10: #{tpu_custom_call.1} parent=1 // pred_check
      _
    $region11: #{tpu_custom_call.1} parent=1 // pred_check_branch
      %33 = sbr.rel (0) target = $region13
    $region12: #{tpu_custom_call.1} parent=1 // pred_region
      %34 = dma.done [#allocation3], 512
    $region13: #{tpu_custom_call.1} parent=1 // pred_fallthru
      _
    // Predicated region
    $region14: #{tpu_custom_call.1} parent=1 // pred_check
      _
    $region15: #{tpu_custom_call.1} parent=1 // pred_check_branch
      %36 = sbr.rel (0) target = $region17
    $region16: #{tpu_custom_call.1} parent=1 // pred_region
      %37 = dma.done [#allocation6], 128
    $region17: #{tpu_custom_call.1} parent=1 // pred_fallthru
      _
    %v38 = vld [vmem:[#allocation5] sm:$0xff]
    %v39 = vld [vmem:[#allocation2] sm:$0xff]
    %v40 = vld [vmem:[#allocation2 + $0x8] sm:$0xff]
    %v41 = vld [vmem:[#allocation2 + $0x10] sm:$0xff]
    %v42 = vld [vmem:[#allocation2 + $0x18] sm:$0xff]
    %vm43 = vcmask 261120
    %v45 = vsel %vm43, %v38, 0
    %47 = vmatprep.subr.mxu0 0.0
    %48 = vmatpush1.msra.mxu0 0.0
    %49 = vmatprep.subr.mxu0 0.0
    %50 = vmatpush1.msra.mxu0 0.0
    %51 = vmatprep.subr.mxu0 0.0
    %52 = vmatpush1.msra.mxu0 0.0
    %53 = vmatprep.subr.mxu0 0.0
    %54 = vmatpush1.msra.mxu0 0.0
    %55 = vmatprep.subr.mxu0 0.0
    %56 = vmatpush1.msra.mxu0 0.0
    %57 = vmatprep.subr.mxu0 0.0
    %58 = vmatpush1.msra.mxu0 0.0
    %59 = vmatprep.subr.mxu0 0.0
    %60 = vmatpush1.msra.mxu0 0.0
    %61 = vmatprep.subr.mxu0 0.0
    %62 = vmatpush1.msra.mxu0 0.0
    %63 = vmatprep.subr.mxu0 0.0
    %64 = vmatpush1.msra.mxu0 0.0
    %65 = vmatprep.subr.mxu0 0.0
    %66 = vmatpush1.msra.mxu0 0.0
    %67 = vmatprep.subr.mxu0 0.0
    %68 = vmatpush1.msra.mxu0 0.0
    %69 = vmatprep.subr.mxu0 0.0
    %70 = vmatpush1.msra.mxu0 0.0
    %71 = vmatprep.subr.mxu0 0.0
    %72 = vmatpush1.msra.mxu0 %v42
    %73 = vmatprep.subr.mxu0 0.0
    %74 = vmatpush1.msra.mxu0 %v41
    %75 = vmatprep.subr.mxu0 0.0
    %76 = vmatpush1.msra.mxu0 %v40
    %77 = vmatprep.subr.mxu0 0.0
    %78 = vmatpush1.msra.mxu0 %v39
    %79 = vmatprep.subr.mxu0 0.0
    %80 = vmatpush2.msra.mxu0 0.0
    %81 = vmatprep.subr.mxu0 0.0
    %82 = vmatpush2.msra.mxu0 0.0
    %83 = vmatprep.subr.mxu0 0.0
    %84 = vmatpush2.msra.mxu0 0.0
    %85 = vmatprep.subr.mxu0 0.0
    %86 = vmatpush2.msra.mxu0 0.0
    %87 = vmatprep.subr.mxu0 0.0
    %88 = vmatpush2.msra.mxu0 0.0
    %89 = vmatprep.subr.mxu0 0.0
    %90 = vmatpush2.msra.mxu0 0.0
    %91 = vmatprep.subr.mxu0 0.0
    %92 = vmatpush2.msra.mxu0 0.0
    %93 = vmatprep.subr.mxu0 0.0
    %94 = vmatpush2.msra.mxu0 0.0
    %95 = vmatprep.subr.mxu0 0.0
    %96 = vmatpush2.msra.mxu0 0.0
    %97 = vmatprep.subr.mxu0 0.0
    %98 = vmatpush2.msra.mxu0 0.0
    %99 = vmatprep.subr.mxu0 0.0
    %100 = vmatpush2.msra.mxu0 0.0
    %101 = vmatprep.subr.mxu0 0.0
    %102 = vmatpush2.msra.mxu0 0.0
    %103 = vmatprep.subr.mxu0 0.0
    %104 = vmatpush2.msra.mxu0 0.0
    %105 = vmatprep.subr.mxu0 0.0
    %106 = vmatpush2.msra.mxu0 0.0
    %107 = vmatprep.subr.mxu0 0.0
    %108 = vmatpush2.msra.mxu0 0.0
    %109 = vmatprep.subr.mxu0 0.0
    %110 = vmatpush2.msra.mxu0 0.0
    %111 = vmatprep.mubr.f32.mxu0 0.0
    %112 = vmatmul.mubr.f32.gmra.mxu0 %v45
    %v113 = vpop.f32.mrf.mxu0
    %v114 = vadd.f32 0.0, %v113
    %v115 = vpop.f32.mrf.mxu0
    %116 = vdwg.mxu0
    %117 = vst [vmem:[#allocation7] sm:$0xff] %v114
    // Predicated region
    $region18: #{tpu_custom_call.1} parent=1 // pred_check
      _
    $region19: #{tpu_custom_call.1} parent=1 // pred_check_branch
      %119 = sbr.rel (0) target = $region21
    $region20: #{tpu_custom_call.1} parent=1 // pred_region
      %s121 = ssub.s32 128, 128
      %122 = vsyncadd [#allocation4], %s121
      %s124 = sshll.u32 [#allocation7], 4
      %s125 = int_to_ptr.vmem [resolvable:$true] %s124
      %127 = dma.vmem_to_hbm [thread:$0]  %s125, 128, %s2, [#allocation4]
    $region21: #{tpu_custom_call.1} parent=1 // pred_fallthru
      _
    // Predicated region
    $region22: #{tpu_custom_call.1} parent=1 // pred_check
      _
    $region23: #{tpu_custom_call.1} parent=1 // pred_check_branch
      %129 = sbr.rel (0) target = $region25
    $region24: #{tpu_custom_call.1} parent=1 // pred_region
      %130 = dma.done [#allocation4], 128
    $region25: #{tpu_custom_call.1} parent=1 // pred_fallthru
      _
    %131 = vsyncpa [#allocation3], 1
    %132 = vsyncpa [#allocation6], 1
    %133 = vsyncpa [#allocation4], 1

</llo_original>
